<compile_context>
chip_gen: v5e
topology: v5e:2x2
jax: 0.10.0
libtpu: 0.0.40
codegen_flags: <defaults>
</compile_context>

<pallas_src>
import math

import jax
import jax.numpy as jnp
from jax.experimental import pallas as pl
from jax.experimental.pallas import tpu as pltpu

_GELU_C = math.sqrt(2.0 / math.pi)
# 0.5*(1 + tanh(z)) == sigmoid(2z)  =>  GELU(h) = h * sigmoid(h*(2C + 2C*0.044715*h*h))
_G2C = 2.0 * _GELU_C
_G2C3 = 2.0 * _GELU_C * 0.044715


def _gelu_f32(h):
    return h * jax.nn.sigmoid(h * (_G2C + _G2C3 * (h * h)))


# ----------------------------- kernels ---------------------------------------


def ffn_resident_kernel(x_ref, w1_ref, b1_ref, w2_ref, b2_ref, o_ref):
    # Full d_ff resident in VMEM: one fused pass per row tile, no accumulator.
    x = x_ref[...]
    h = jnp.dot(x, w1_ref[...], preferred_element_type=jnp.float32)
    h = h + b1_ref[...]                       # biases are f32
    g = _gelu_f32(h)
    # TODO(synk): dropout is identity here (inference); training-mode dropout would
    # build a keep-mask with pltpu.prng_seed + pltpu.prng_random_bits.
    out = jnp.dot(g.astype(w2_ref.dtype), w2_ref[...],
                  preferred_element_type=jnp.float32)
    o_ref[...] = (out + b2_ref[...]).astype(o_ref.dtype)


def ffn_streamed_kernel(x_ref, w1_ref, b1_ref, w2_ref, b2_ref, o_ref, acc_ref):
    # d_ff streamed in tiles of tf; partial second matmul accumulated in f32 VMEM.
    kf = pl.program_id(1)

    @pl.when(kf == 0)
    def _():
        acc_ref[...] = jnp.zeros_like(acc_ref)

    x = x_ref[...]
    h = jnp.dot(x, w1_ref[...], preferred_element_type=jnp.float32)
    h = h + b1_ref[...]
    g = _gelu_f32(h)
    acc_ref[...] += jnp.dot(g.astype(w2_ref.dtype), w2_ref[...],
                            preferred_element_type=jnp.float32)

    @pl.when(kf == pl.num_programs(1) - 1)
    def _():
        o_ref[...] = (acc_ref[...] + b2_ref[...]).astype(o_ref.dtype)


# --------------------------- sizing helpers -----------------------------------


def _round_up(x, m):
    return ((x + m - 1) // m) * m


def _vmem_capacity_bytes():
    try:
        return int(pltpu.get_tpu_info().vmem_capacity_bytes)
    except Exception:
        return 64 * 1024 * 1024  # conservative: v7x per-TensorCore VMEM


def _pick_tm(M, tm_target):
    """Row tile: MXU-aligned (256) when M is large; >=2 row tiles when possible
    so the 'parallel' token axis shards across v7x's two TensorCores; tiny M
    collapses to a single 8-aligned tile."""
    tm_target = max(256, _round_up(tm_target, 256))
    if M >= 2 * tm_target:
        return tm_target
    if M > 256:
        return min(tm_target, _round_up((M + 1) // 2, 256))
    return max(8, _round_up(M, 8))


def _pick_tf(d_ff, tf_cap):
    """Largest divisor of d_ff that is a multiple of 128 and <= tf_cap."""
    if d_ff <= tf_cap:
        return d_ff
    cap128 = (tf_cap // 128) * 128
    for cand in range(cap128, 0, -128):
        if d_ff % cand == 0:
            return cand
    for cand in range(min(tf_cap, d_ff), 0, -1):
        if d_ff % cand == 0:
            return cand
    return d_ff


def _resident_vmem_bytes(tm, d_model, d_ff, in_b, w_b, out_b):
    return (2 * tm * d_model * in_b            # x tile (double-buffered)
            + 2 * tm * d_model * out_b         # out tile (double-buffered)
            + 2 * 2 * d_model * d_ff * w_b     # w1 + w2 (assume double-buffered)
            + 2 * (d_ff + d_model) * 4         # biases (f32)
            + 2 * tm * d_ff * 4)               # h / g f32 intermediates


def _streamed_vmem_bytes(tm, tf, d_model, in_b, w_b, out_b):
    return (2 * tm * d_model * in_b
            + 2 * tm * d_model * out_b
            + 2 * 2 * d_model * tf * w_b       # w1 col-tile + w2 row-tile
            + 2 * (tf + d_model) * 4
            + tm * d_model * 4                 # f32 accumulator scratch
            + 2 * tm * tf * 4)                 # h / g f32 intermediates


# ------------------------------ wrapper ---------------------------------------


def positionwise_feed_forward(x, w1, b1, w2, b2, *, tm=None, tf_cap=1024,
                              matmul_dtype=None, force_path=None):
    """x: [batch, seq, d_model]; w1: [d_model, d_ff]; b1: [d_ff];
    w2: [d_ff, d_model]; b2: [d_model] (weights pre-transposed to
    (in_features, out_features)).  matmul_dtype=jnp.bfloat16 enables bf16 MXU
    matmuls with f32 accumulation (recommended in production)."""
    batch, seq, d_model = x.shape
    d_ff = w1.shape[1]
    M = batch * seq
    out_dtype = x.dtype

    mm_dtype = jnp.dtype(matmul_dtype) if matmul_dtype is not None else jnp.dtype(x.dtype)
    in_b = w_b = mm_dtype.itemsize
    out_b = jnp.dtype(out_dtype).itemsize

    vmem_cap = _vmem_capacity_bytes()
    vmem_limit = min((vmem_cap * 7) // 8, 112 * 1024 * 1024)
    budget = int(vmem_limit * 0.85)

    if tm is None:
        tm = 1024 if vmem_cap >= 128 * 1024 * 1024 else 512  # v5e/v6e vs v7x
    tm = _pick_tm(M, tm)

    use_resident = _resident_vmem_bytes(tm, d_model, d_ff, in_b, w_b, out_b) <= budget
    if force_path == "resident":
        use_resident = True
    elif force_path == "streamed":
        use_resident = False

    tf = d_ff
    if not use_resident:
        tf = _pick_tf(d_ff, tf_cap)
        # Shrink tiles until the streamed footprint fits the VMEM budget.
        while _streamed_vmem_bytes(tm, tf, d_model, in_b, w_b, out_b) > budget:
            if tf > 128:
                tf = _pick_tf(d_ff, max(128, tf // 2))
            elif tm > 256:
                tm = max(256, tm // 2)
            else:
                break

    M_pad = _round_up(M, tm)
    grid_rows = M_pad // tm

    x2d = x.reshape(M, d_model)
    if M_pad != M:
        x2d = jnp.pad(x2d, ((0, M_pad - M), (0, 0)))
    x2d = x2d.astype(mm_dtype)
    w1c = w1.astype(mm_dtype)
    w2c = w2.astype(mm_dtype)
    b1_2d = b1.reshape(1, d_ff).astype(jnp.float32)
    b2_2d = b2.reshape(1, d_model).astype(jnp.float32)

    flops = 4 * M_pad * d_model * d_ff           # two matmuls: 2*M*dm*dff each
    transcendentals = M_pad * d_ff               # one sigmoid per hidden element
    weight_bytes = (w1c.size + w2c.size) * w_b + (b1_2d.size + b2_2d.size) * 4
    io_bytes = x2d.size * in_b + M_pad * d_model * out_b

    if use_resident:
        cost = pl.CostEstimate(flops=flops, transcendentals=transcendentals,
                               bytes_accessed=io_bytes + weight_bytes)
        out2d = pl.pallas_call(
            ffn_resident_kernel,
            out_shape=jax.ShapeDtypeStruct((M_pad, d_model), out_dtype),
            grid_spec=pltpu.PrefetchScalarGridSpec(
                num_scalar_prefetch=0,
                grid=(grid_rows,),
                in_specs=[
                    pl.BlockSpec((tm, d_model), lambda i: (i, 0)),      # x row tile
                    pl.BlockSpec((d_model, d_ff), lambda i: (0, 0)),    # w1 (resident)
                    pl.BlockSpec((1, d_ff), lambda i: (0, 0)),          # b1
                    pl.BlockSpec((d_ff, d_model), lambda i: (0, 0)),    # w2 (resident)
                    pl.BlockSpec((1, d_model), lambda i: (0, 0)),       # b2
                ],
                out_specs=pl.BlockSpec((tm, d_model), lambda i: (i, 0)),
            ),
            compiler_params=pltpu.CompilerParams(
                dimension_semantics=("parallel",),
                vmem_limit_bytes=vmem_limit,
            ),
            cost_estimate=cost,
        )(x2d, w1c, b1_2d, w2c, b2_2d)
    else:
        cost = pl.CostEstimate(flops=flops, transcendentals=transcendentals,
                               bytes_accessed=io_bytes + weight_bytes * grid_rows)
        out2d = pl.pallas_call(
            ffn_streamed_kernel,
            out_shape=jax.ShapeDtypeStruct((M_pad, d_model), out_dtype),
            grid_spec=pltpu.PrefetchScalarGridSpec(
                num_scalar_prefetch=0,
                grid=(grid_rows, d_ff // tf),      # reduction (d_ff) axis last
                in_specs=[
                    pl.BlockSpec((tm, d_model), lambda i, kf: (i, 0)),   # x row tile
                    pl.BlockSpec((d_model, tf), lambda i, kf: (0, kf)),  # w1 col tile
                    pl.BlockSpec((1, tf), lambda i, kf: (0, kf)),        # b1 tile
                    pl.BlockSpec((tf, d_model), lambda i, kf: (kf, 0)),  # w2 row tile
                    pl.BlockSpec((1, d_model), lambda i, kf: (0, 0)),    # b2 (full)
                ],
                out_specs=pl.BlockSpec((tm, d_model), lambda i, kf: (i, 0)),
                scratch_shapes=[pltpu.VMEM((tm, d_model), jnp.float32)],
            ),
            compiler_params=pltpu.CompilerParams(
                dimension_semantics=("parallel", "arbitrary"),
                vmem_limit_bytes=vmem_limit,
            ),
            cost_estimate=cost,
        )(x2d, w1c, b1_2d, w2c, b2_2d)

    if M_pad != M:
        out2d = out2d[:M]
    return out2d.reshape(batch, seq, d_model)


# ------------------------------ reference -------------------------------------


def ffn_reference(x, w1, b1, w2, b2):
    h = jnp.dot(x, w1) + b1
    g = 0.5 * h * (1.0 + jnp.tanh(_GELU_C * (h + 0.044715 * (h ** 3))))
    return jnp.dot(g, w2) + b2


if __name__ == "__main__":
    batch, seq, d_model, d_ff = 2, 8, 32, 64

    key = jax.random.PRNGKey(0)
    kx, kw1, kb1, kw2, kb2 = jax.random.split(key, 5)

    x = jax.random.normal(kx, (batch, seq, d_model), dtype=jnp.float32)
    # nn.Linear(d_model, d_ff) / nn.Linear(d_ff, d_model) params, pre-transposed
    # to (in_features, out_features).
    w1 = jax.random.normal(kw1, (d_model, d_ff), dtype=jnp.float32) / math.sqrt(d_model)
    b1 = jax.random.normal(kb1, (d_ff,), dtype=jnp.float32) * 0.01
    w2 = jax.random.normal(kw2, (d_ff, d_model), dtype=jnp.float32) / math.sqrt(d_ff)
    b2 = jax.random.normal(kb2, (d_model,), dtype=jnp.float32) * 0.01

    ref = ffn_reference(x, w1, b1, w2, b2)

    # 1) Weights-resident fast path, f32 compute.
    out = jax.block_until_ready(positionwise_feed_forward(x, w1, b1, w2, b2))
    assert out.shape == (batch, seq, d_model)
    assert jnp.allclose(out, ref, atol=1e-4, rtol=1e-4), "resident path mismatch"

    # 2) Streamed path with a multi-step d_ff reduction (exercises the accumulator).
    d_ff2 = 256
    kw1b, kw2b = jax.random.split(kw1)
    w1b = jax.random.normal(kw1b, (d_model, d_ff2), dtype=jnp.float32) / math.sqrt(d_model)
    b1b = jax.random.normal(kb1, (d_ff2,), dtype=jnp.float32) * 0.01
    w2b = jax.random.normal(kw2b, (d_ff2, d_model), dtype=jnp.float32) / math.sqrt(d_ff2)
    ref2 = ffn_reference(x, w1b, b1b, w2b, b2)
    out2 = jax.block_until_ready(positionwise_feed_forward(
        x, w1b, b1b, w2b, b2, tf_cap=128, force_path="streamed"))
    assert jnp.allclose(out2, ref2, atol=1e-4, rtol=1e-4), "streamed path mismatch"

    # 3) Production fast path: bf16 matmuls with f32 accumulation (loose tolerance).
    out_bf16 = jax.block_until_ready(positionwise_feed_forward(
        x, w1, b1, w2, b2, matmul_dtype=jnp.bfloat16))
    assert out_bf16.dtype == x.dtype
    assert jnp.allclose(out_bf16, ref, atol=1e-1, rtol=1e-1), "bf16 path mismatch"

    print("KERNEL_OK")
</pallas_src>

<mosaic_0001>
module attributes {stable_mosaic.version = 11 : i64} {
  func.func @ffn_resident_kernel(%arg0: i32, %arg1: memref<16x32xf32, #tpu.memory_space<vmem>>, %arg2: memref<32x64xf32, #tpu.memory_space<vmem>>, %arg3: memref<1x64xf32, #tpu.memory_space<vmem>>, %arg4: memref<64x32xf32, #tpu.memory_space<vmem>>, %arg5: memref<1x32xf32, #tpu.memory_space<vmem>>, %arg6: memref<16x32xf32, #tpu.memory_space<vmem>>) attributes {dimension_semantics = [#tpu.dimension_semantics<parallel>], iteration_bounds = array<i64: 1>, scalar_prefetch = 0 : i64, scratch_operands = 0 : i64, tpu.core_type = #tpu.core_type<tc>, window_params = [{transform_indices = @transform_0, window_bounds = array<i64: 16, 32>}, {pipeline_mode = #tpu.pipeline_mode<synchronous>, transform_indices = @transform_1, window_bounds = array<i64: 32, 64>}, {pipeline_mode = #tpu.pipeline_mode<synchronous>, transform_indices = @transform_2, window_bounds = array<i64: 1, 64>}, {pipeline_mode = #tpu.pipeline_mode<synchronous>, transform_indices = @transform_3, window_bounds = array<i64: 64, 32>}, {pipeline_mode = #tpu.pipeline_mode<synchronous>, transform_indices = @transform_4, window_bounds = array<i64: 1, 32>}, {transform_indices = @transform_5, window_bounds = array<i64: 16, 32>}]} {
    %c0 = arith.constant 0 : index
    %c0_0 = arith.constant 0 : index
    %0 = vector.load %arg1[%c0, %c0_0] : memref<16x32xf32, #tpu.memory_space<vmem>>, vector<16x32xf32>
    %c0_1 = arith.constant 0 : index
    %c0_2 = arith.constant 0 : index
    %1 = vector.load %arg2[%c0_1, %c0_2] : memref<32x64xf32, #tpu.memory_space<vmem>>, vector<32x64xf32>
    %cst = arith.constant dense<0.000000e+00> : vector<16x64xf32>
    %2 = tpu.matmul %0, %1, %cst {dimension_numbers = #tpu.dot_dimension_numbers<[1], [0], [0], [1], [0, 0, 1, 1], [], []>} : vector<16x32xf32>, vector<32x64xf32>, vector<16x64xf32> -> vector<16x64xf32>
    %c0_3 = arith.constant 0 : index
    %c0_4 = arith.constant 0 : index
    %3 = vector.load %arg3[%c0_3, %c0_4] : memref<1x64xf32, #tpu.memory_space<vmem>>, vector<1x64xf32>
    %4 = vector.broadcast %3 : vector<1x64xf32> to vector<16x64xf32>
    %5 = arith.addf %2, %4 : vector<16x64xf32>
    %6 = arith.mulf %5, %5 : vector<16x64xf32>
    %cst_5 = arith.constant 0.0713548139 : f32
    %7 = vector.broadcast %cst_5 : f32 to vector<16x64xf32>
    %8 = arith.mulf %7, %6 : vector<16x64xf32>
    %cst_6 = arith.constant 1.59576917 : f32
    %9 = vector.broadcast %cst_6 : f32 to vector<16x64xf32>
    %10 = arith.addf %9, %8 : vector<16x64xf32>
    %11 = arith.mulf %5, %10 : vector<16x64xf32>
    %12 = arith.negf %11 : vector<16x64xf32>
    %13 = math.exp %12 : vector<16x64xf32>
    %cst_7 = arith.constant 1.000000e+00 : f32
    %14 = vector.broadcast %cst_7 : f32 to vector<16x64xf32>
    %15 = arith.addf %14, %13 : vector<16x64xf32>
    %16 = arith.divf %14, %15 : vector<16x64xf32>
    %17 = arith.mulf %5, %16 : vector<16x64xf32>
    %c0_8 = arith.constant 0 : index
    %c0_9 = arith.constant 0 : index
    %18 = vector.load %arg4[%c0_8, %c0_9] : memref<64x32xf32, #tpu.memory_space<vmem>>, vector<64x32xf32>
    %cst_10 = arith.constant dense<0.000000e+00> : vector<16x32xf32>
    %19 = tpu.matmul %17, %18, %cst_10 {dimension_numbers = #tpu.dot_dimension_numbers<[1], [0], [0], [1], [0, 0, 1, 1], [], []>} : vector<16x64xf32>, vector<64x32xf32>, vector<16x32xf32> -> vector<16x32xf32>
    %c0_11 = arith.constant 0 : index
    %c0_12 = arith.constant 0 : index
    %20 = vector.load %arg5[%c0_11, %c0_12] : memref<1x32xf32, #tpu.memory_space<vmem>>, vector<1x32xf32>
    %21 = vector.broadcast %20 : vector<1x32xf32> to vector<16x32xf32>
    %22 = arith.addf %19, %21 : vector<16x32xf32>
    %c0_13 = arith.constant 0 : index
    %c0_14 = arith.constant 0 : index
    %23 = vector.load %arg6[%c0_13, %c0_14] : memref<16x32xf32, #tpu.memory_space<vmem>>, vector<16x32xf32>
    tpu.vector_store %arg6[%c0_13, %c0_14], %22 {strides = array<i32>} : memref<16x32xf32, #tpu.memory_space<vmem>>, vector<16x32xf32>,
    return
  }
  func.func @transform_0(%arg0: i32) -> (i32, i32) {
    %c0_i32 = arith.constant 0 : i32
    %c0_i32_0 = arith.constant 0 : i32
    return %arg0, %c0_i32 : i32, i32
  }
  func.func @transform_1(%arg0: i32) -> (i32, i32) {
    %c0_i32 = arith.constant 0 : i32
    %c0_i32_0 = arith.constant 0 : i32
    %c0_i32_1 = arith.constant 0 : i32
    return %c0_i32, %c0_i32_0 : i32, i32
  }
  func.func @transform_2(%arg0: i32) -> (i32, i32) {
    %c0_i32 = arith.constant 0 : i32
    %c0_i32_0 = arith.constant 0 : i32
    %c0_i32_1 = arith.constant 0 : i32
    return %c0_i32, %c0_i32_0 : i32, i32
  }
  func.func @transform_3(%arg0: i32) -> (i32, i32) {
    %c0_i32 = arith.constant 0 : i32
    %c0_i32_0 = arith.constant 0 : i32
    %c0_i32_1 = arith.constant 0 : i32
    return %c0_i32, %c0_i32_0 : i32, i32
  }
  func.func @transform_4(%arg0: i32) -> (i32, i32) {
    %c0_i32 = arith.constant 0 : i32
    %c0_i32_0 = arith.constant 0 : i32
    %c0_i32_1 = arith.constant 0 : i32
    return %c0_i32, %c0_i32_0 : i32, i32
  }
  func.func @transform_5(%arg0: i32) -> (i32, i32) {
    %c0_i32 = arith.constant 0 : i32
    %c0_i32_0 = arith.constant 0 : i32
    return %arg0, %c0_i32 : i32, i32
  }
}

</mosaic_0001>

<llo_original>
// kernel: tpu_custom_call.1
$region0: #{tpu_custom_call.1}
  #allocation0 [shape = 'u32[]', space=smem, size = 0x4, offset = 0x4, fixed_abs, tag = 'smem constant byte address 0x4 - core index']
  #allocation1 [shape = 'u32[72,128]{1,0:T(1,128)}', space=vmem, size = 0x9000, scoped, tag = 'internal scratch']
  %s0 = inlined_call_operand.vmem [shape: f32[16,32], index: 0, kind: input, shape index: {}]
  %s1 = inlined_call_operand.vmem [shape: f32[32,64], index: 1, kind: input, shape index: {}]
  %s2 = inlined_call_operand.vmem [shape: f32[1,64], index: 2, kind: input, shape index: {}]
  %s3 = inlined_call_operand.vmem [shape: f32[64,32], index: 3, kind: input, shape index: {}]
  %s4 = inlined_call_operand.vmem [shape: f32[1,32], index: 4, kind: input, shape index: {}]
  %s5 = inlined_call_operand.hbm [shape: f32[16,32], index: 5, kind: output, shape index: {}]
  %s6 = sld [smem:[#allocation0]]
  $region30: #{tpu_custom_call.1} parent=0
    _
  %s8 = ssub.s32 1, %s6
  %s9 = scalar_select 0, %s8, %s6
  $region1: #{tpu_custom_call.1} parent=0
    #allocation2 [shape = 'u8[8192]{0}', space=vmem, size = 0x2000, scoped, tag = 'output window, operand 0, single buffered']
    #allocation3 [shape = 's32[1]{0}', space=sflag, size = 0x4, scoped, tag = 'scoped memory for tpu_custom_call.1']
    %10 = vsyncpa [#allocation3], 0
    // Predicated region
    $region2: #{tpu_custom_call.1} parent=1 // pred_check
      _
    $region3: #{tpu_custom_call.1} parent=1 // pred_check_branch
      %12 = sbr.rel (0) target = $region5
    $region4: #{tpu_custom_call.1} parent=1 // pred_region
      _
    $region5: #{tpu_custom_call.1} parent=1 // pred_fallthru
      _
    // Predicated region
    $region6: #{tpu_custom_call.1} parent=1 // pred_check
      _
    $region7: #{tpu_custom_call.1} parent=1 // pred_check_branch
      %14 = sbr.rel (0) target = $region9
    $region8: #{tpu_custom_call.1} parent=1 // pred_region
      _
    $region9: #{tpu_custom_call.1} parent=1 // pred_fallthru
      _
    // Predicated region
    $region10: #{tpu_custom_call.1} parent=1 // pred_check
      _
    $region11: #{tpu_custom_call.1} parent=1 // pred_check_branch
      %16 = sbr.rel (0) target = $region13
    $region12: #{tpu_custom_call.1} parent=1 // pred_region
      _
    $region13: #{tpu_custom_call.1} parent=1 // pred_fallthru
      _
    // Predicated region
    $region14: #{tpu_custom_call.1} parent=1 // pred_check
      _
    $region15: #{tpu_custom_call.1} parent=1 // pred_check_branch
      %18 = sbr.rel (0) target = $region17
    $region16: #{tpu_custom_call.1} parent=1 // pred_region
      _
    $region17: #{tpu_custom_call.1} parent=1 // pred_fallthru
      _
    // Predicated region
    $region18: #{tpu_custom_call.1} parent=1 // pred_check
      _
    $region19: #{tpu_custom_call.1} parent=1 // pred_check_branch
      %20 = sbr.rel (0) target = $region21
    $region20: #{tpu_custom_call.1} parent=1 // pred_region
      _
    $region21: #{tpu_custom_call.1} parent=1 // pred_fallthru
      _
    %v21 = vld [vmem:[%s0] sm:$0xff]
    %v22 = vld [vmem:[%s0 + $0x8] sm:$0xff]
    %v23 = vld [vmem:[%s1] sm:$0xff]
    %v24 = vld [vmem:[%s1 + $0x8] sm:$0xff]
    %v25 = vld [vmem:[%s1 + $0x10] sm:$0xff]
    %v26 = vld [vmem:[%s1 + $0x18] sm:$0xff]
    %v27 = vld [vmem:[%s2] sm:$0x1]
    %v29 = vperm.slane %v27, 0
    %vm31 = vcmask 261120
    %v33 = vsel %vm31, %v21, 0
    %v36 = vsel %vm31, %v22, 0
    %38 = vmatpush.msra.mxu0 0.0
    %39 = vmatpush.msra.mxu0 0.0
    %40 = vmatpush.msra.mxu0 0.0
    %41 = vmatpush.msra.mxu0 0.0
    %42 = vmatpush.msra.mxu0 0.0
    %43 = vmatpush.msra.mxu0 0.0
    %44 = vmatpush.msra.mxu0 0.0
    %45 = vmatpush.msra.mxu0 0.0
    %46 = vmatpush.msra.mxu0 0.0
    %47 = vmatpush.msra.mxu0 0.0
    %48 = vmatpush.msra.mxu0 0.0
    %49 = vmatpush.msra.mxu0 0.0
    %50 = vmatpush.msra.mxu0 %v26
    %51 = vmatpush.msra.mxu0 %v25
    %52 = vmatpush.msra.mxu0 %v24
    %53 = vmatpush.msra.mxu0 %v23
    %54 = vmatmul.f32.gmra.mxu0 %v33
    %v55 = vpop.f32.mrf.mxu0
    %v56 = vadd.f32 %v29, %v55
    %57 = vmatmul.f32.gmra.mxu0 %v36
    %v58 = vpop.f32.mrf.mxu0
    %v59 = vadd.f32 %v29, %v58
    %60 = vdwg.mxu0
    %v61 = vmul.f32 %v56, %v56
    %v62 = vmul.f32 %v59, %v59
    %v63 = vmul.f32 %v61, 0.071354814
    %v64 = vmul.f32 %v62, 0.071354814
    %v65 = vadd.f32 %v63, 1.5957692
    %v66 = vadd.f32 %v64, 1.5957692
    %v67 = vmul.f32 %v56, %v65
    %v68 = vmul.f32 %v59, %v66
    %v69 = vxor.u32 %v67, 2147483648
    %v70 = vxor.u32 %v68, 2147483648
    %v71 = vmul.f32 %v69, 1.442695
    %v72 = vpow.pop %v71
    %v73 = vmul.f32 %v70, 1.442695
    %v74 = vpow.pop %v73
    %v75 = vadd.f32 %v72, 1.0
    %v76 = vadd.f32 %v74, 1.0
    %v77 = vrcp.pop %v75
    %v78 = vmul.f32 %v75, %v77
    %v79 = vsub.f32 1.0, %v78
    %v80 = vmul.f32 %v77, %v79
    %v81 = vadd.f32 %v77, %v80
    %vm82 = vweird.f32 %v75
    %vm83 = vweird.f32 %v77
    %vm84 = vmor %vm82, %vm83
    %v85 = vsel %vm84, %v77, %v81
    %v86 = vand.u32 2147483647, %v75
    %vm87 = vcmp.eq.f32.partialorder %v86, 8.507059e+37
    %v88 = vand.u32 %v75, 2147483648
    %v89 = vor.u32 1.1754944e-38, %v88
    %v90 = vsel %vm87, %v89, %v85
    %v91 = vmul.f32 1.0, %v90
    %v92 = vrcp.pop %v76
    %v93 = vmul.f32 %v76, %v92
    %v94 = vsub.f32 1.0, %v93
    %v95 = vmul.f32 %v92, %v94
    %v96 = vadd.f32 %v92, %v95
    %vm97 = vweird.f32 %v76
    %vm98 = vweird.f32 %v92
    %vm99 = vmor %vm97, %vm98
    %v100 = vsel %vm99, %v92, %v96
    %v101 = vand.u32 2147483647, %v76
    %vm102 = vcmp.eq.f32.partialorder %v101, 8.507059e+37
    %v103 = vand.u32 %v76, 2147483648
    %v104 = vor.u32 1.1754944e-38, %v103
    %v105 = vsel %vm102, %v104, %v100
    %v106 = vmul.f32 1.0, %v105
    %v107 = vmul.f32 %v56, %v91
    %v108 = vmul.f32 %v59, %v106
    %v109 = vld [vmem:[%s3] sm:$0xff]
    %v110 = vld [vmem:[%s3 + $0x8] sm:$0xff]
    %v111 = vld [vmem:[%s3 + $0x10] sm:$0xff]
    %v112 = vld [vmem:[%s3 + $0x18] sm:$0xff]
    %v113 = vld [vmem:[%s3 + $0x20] sm:$0xff]
    %v114 = vld [vmem:[%s3 + $0x28] sm:$0xff]
    %v115 = vld [vmem:[%s3 + $0x30] sm:$0xff]
    %v116 = vld [vmem:[%s3 + $0x38] sm:$0xff]
    %v117 = vld [vmem:[%s4] sm:$0x1]
    %v119 = vperm.slane %v117, 0
    %vm121 = vcmask 523264
    %v123 = vsel %vm121, %v107, 0
    %v126 = vsel %vm121, %v108, 0
    %128 = vmatpush.msra.mxu0 0.0
    %129 = vmatpush.msra.mxu0 0.0
    %130 = vmatpush.msra.mxu0 0.0
    %131 = vmatpush.msra.mxu0 0.0
    %132 = vmatpush.msra.mxu0 0.0
    %133 = vmatpush.msra.mxu0 0.0
    %134 = vmatpush.msra.mxu0 0.0
    %135 = vmatpush.msra.mxu0 0.0
    %136 = vmatpush.msra.mxu0 %v116
    %137 = vmatpush.msra.mxu0 %v115
    %138 = vmatpush.msra.mxu0 %v114
    %139 = vmatpush.msra.mxu0 %v113
    %140 = vmatpush.msra.mxu0 %v112
    %141 = vmatpush.msra.mxu0 %v111
    %142 = vmatpush.msra.mxu0 %v110
    %143 = vmatpush.msra.mxu0 %v109
    %144 = vmatmul.f32.gmra.mxu0 %v123
    %v145 = vpop.f32.mrf.mxu0
    %v146 = vadd.f32 %v119, %v145
    %147 = vmatmul.f32.gmra.mxu0 %v126
    %v148 = vpop.f32.mrf.mxu0
    %v149 = vadd.f32 %v119, %v148
    %150 = vdwg.mxu0
    %151 = vst.msk [vmem:[#allocation2] sm:$0xff] %vm31, %v146
    %152 = vst.msk [vmem:[#allocation2 + $0x8] sm:$0xff] %vm31, %v149
    // Predicated region
    $region22: #{tpu_custom_call.1} parent=1 // pred_check
      _
    $region23: #{tpu_custom_call.1} parent=1 // pred_check_branch
      %154 = sbr.rel (0) target = $region25
    $region24: #{tpu_custom_call.1} parent=1 // pred_region
      %156 = vsyncadd [#allocation3], 0
      %s157 = sshll.u32 [#allocation2], 4
      %s158 = int_to_ptr.vmem [resolvable:$true] %s157
      %s159 = sshll.u32 %s5, 4
      %s160 = int_to_ptr.hbm [resolvable:$true] %s159
      %165 = dma.vmem_to_hbm [thread:$0]  %s158, 256, %s160, [#allocation3], 128, 128, 8
    $region25: #{tpu_custom_call.1} parent=1 // pred_fallthru
      _
    // Predicated region
    $region26: #{tpu_custom_call.1} parent=1 // pred_check
      _
    $region27: #{tpu_custom_call.1} parent=1 // pred_check_branch
      %167 = sbr.rel (0) target = $region29
    $region28: #{tpu_custom_call.1} parent=1 // pred_region
      %169 = dma.done [#allocation3], 256
    $region29: #{tpu_custom_call.1} parent=1 // pred_fallthru
      _
    %170 = vsyncpa [#allocation3], 1

</llo_original>
